<compile_context>
chip_gen: v7x
topology: tpu7x:2x2x1
jax: 0.10.0
libtpu: 0.0.40
codegen_flags: <defaults>
</compile_context>

<pallas_src>
import jax
import jax.numpy as jnp
from jax.experimental import pallas as pl
from jax.experimental.pallas import tpu as pltpu

LANES = 128
SUBLANES = 8
MAX_BLOCK_ROWS = 2048   # (2048, 128) f32 = 1 MiB per input block
NUM_SHARDS = 2          # outer "parallel" axis (v7x dual-TensorCore split)


def _round_up(x, m):
    return ((x + m - 1) // m) * m


def _make_partial_sums_kernel(block_rows, in_dtype):
    """Emits per-shard (8, 128) partial sums of d^2 and |d|."""
    upcast = jnp.dtype(in_dtype) != jnp.dtype(jnp.float32)
    n_groups = block_rows // SUBLANES

    def kernel(pred_ref, tgt_ref, sq_ref, abs_ref):
        i = pl.program_id(1)  # reduction axis (innermost, "arbitrary")

        @pl.when(i == 0)
        def _init():
            sq_ref[...] = jnp.zeros_like(sq_ref)
            abs_ref[...] = jnp.zeros_like(abs_ref)

        x = pred_ref[...]
        y = tgt_ref[...]
        if upcast:  # only emit the cast when inputs are not already f32
            x = x.astype(jnp.float32)
            y = y.astype(jnp.float32)
        d = x - y

        # Partially reduce the big (block_rows, 128) tile down to one vreg
        # (8, 128) before accumulating: the reshape groups whole (8, 128)
        # vreg tiles (layout preserving) and the sum over axis 0 is plain
        # VPU adds across vregs, hidden under the DMA stream.
        sq = (d * d).reshape(n_groups, SUBLANES, LANES)
        ab = jnp.abs(d).reshape(n_groups, SUBLANES, LANES)
        sq_ref[...] += jnp.sum(sq, axis=0)[None]
        abs_ref[...] += jnp.sum(ab, axis=0)[None]

    return kernel


def combo_loss(pred, target, weights=(1.0, 0.5)):
    """Returns (total_loss, per_loss) with per_loss = [w_mse*mse, w_l1*l1]."""
    assert pred.shape == target.shape
    w_mse, w_l1 = float(weights[0]), float(weights[1])
    n = pred.size

    # Choose tiling: big lane-dense blocks, padded with zeros (zero diff ->
    # zero contribution to both sums, so padding is numerically inert).
    rows = pl.cdiv(n, LANES)
    block_rows = min(
        MAX_BLOCK_ROWS,
        _round_up(pl.cdiv(rows, NUM_SHARDS), 2 * SUBLANES),  # multiple of 16
    )
    rows_padded = _round_up(rows, NUM_SHARDS * block_rows)
    steps = rows_padded // (NUM_SHARDS * block_rows)
    padded_n = rows_padded * LANES

    pred_flat = pred.reshape(-1)
    tgt_flat = target.reshape(-1)
    if padded_n != n:
        pad = padded_n - n
        pred_flat = jnp.pad(pred_flat, (0, pad))
        tgt_flat = jnp.pad(tgt_flat, (0, pad))
    pred2 = pred_flat.reshape(rows_padded, LANES)
    tgt2 = tgt_flat.reshape(rows_padded, LANES)

    kernel = _make_partial_sums_kernel(block_rows, pred.dtype)

    sq_part, abs_part = pl.pallas_call(
        kernel,
        out_shape=(
            jax.ShapeDtypeStruct((NUM_SHARDS, SUBLANES, LANES), jnp.float32),
            jax.ShapeDtypeStruct((NUM_SHARDS, SUBLANES, LANES), jnp.float32),
        ),
        grid_spec=pltpu.PrefetchScalarGridSpec(
            num_scalar_prefetch=0,
            grid=(NUM_SHARDS, steps),
            in_specs=[
                pl.BlockSpec((block_rows, LANES),
                             lambda c, i: (c * steps + i, 0)),
                pl.BlockSpec((block_rows, LANES),
                             lambda c, i: (c * steps + i, 0)),
            ],
            out_specs=[
                pl.BlockSpec((1, SUBLANES, LANES), lambda c, i: (c, 0, 0)),
                pl.BlockSpec((1, SUBLANES, LANES), lambda c, i: (c, 0, 0)),
            ],
        ),
        compiler_params=pltpu.CompilerParams(
            dimension_semantics=("parallel", "arbitrary"),
        ),
    )(pred2, tgt2)

    # Final tiny reduce + weighting in the wrapper (2 x 2 KiB of data).
    inv_n = 1.0 / float(n)
    loss_mse = jnp.sum(sq_part) * inv_n * w_mse   # stands in for log('loss.mse', ...)
    loss_l1 = jnp.sum(abs_part) * inv_n * w_l1    # stands in for log('loss.l1', ...)
    total = loss_mse + loss_l1
    per = jnp.stack([loss_mse, loss_l1])
    return total, per


if __name__ == "__main__":
    key = jax.random.PRNGKey(0)
    k1, k2 = jax.random.split(key)

    # Small NCHW-shaped inputs consistent with an image-loss use case.
    B, C, H, W = 2, 4, 16, 16
    pred = jax.random.normal(k1, (B, C, H, W), dtype=jnp.float32)
    target = jax.random.normal(k2, (B, C, H, W), dtype=jnp.float32)

    weights = (1.0, 0.5)  # (mse weight, l1 weight)

    total, per = combo_loss(pred, target, weights)
    total = jax.block_until_ready(total)
    per = jax.block_until_ready(per)

    # Pure-JAX reference for correctness.
    d = pred - target
    ref_mse = jnp.mean(d * d) * weights[0]
    ref_l1 = jnp.mean(jnp.abs(d)) * weights[1]
    ref_total = ref_mse + ref_l1

    assert jnp.allclose(total, ref_total, rtol=1e-5, atol=1e-6), (total, ref_total)
    assert jnp.allclose(per[0], ref_mse, rtol=1e-5, atol=1e-6)
    assert jnp.allclose(per[1], ref_l1, rtol=1e-5, atol=1e-6)

    print("KERNEL_OK")
</pallas_src>

<mosaic_0001>
module attributes {stable_mosaic.version = 11 : i64} {
  func.func @kernel(%arg0: i32, %arg1: i32, %arg2: memref<16x128xf32, #tpu.memory_space<vmem>>, %arg3: memref<16x128xf32, #tpu.memory_space<vmem>>, %arg4: memref<1x8x128xf32, #tpu.memory_space<vmem>>, %arg5: memref<1x8x128xf32, #tpu.memory_space<vmem>>) attributes {dimension_semantics = [#tpu.dimension_semantics<parallel>, #tpu.dimension_semantics<arbitrary>], iteration_bounds = array<i64: 2, 1>, scalar_prefetch = 0 : i64, scratch_operands = 0 : i64, tpu.core_type = #tpu.core_type<tc>, window_params = [{transform_indices = @transform_0, window_bounds = array<i64: 16, 128>}, {transform_indices = @transform_1, window_bounds = array<i64: 16, 128>}, {transform_indices = @transform_2, window_bounds = array<i64: 1, 8, 128>}, {transform_indices = @transform_3, window_bounds = array<i64: 1, 8, 128>}]} {
    %c0_i32 = arith.constant 0 : i32
    %0 = arith.cmpi eq, %arg1, %c0_i32 : i32
    %1 = arith.extui %0 : i1 to i32
    %c0_i32_0 = arith.constant 0 : i32
    %2 = arith.cmpi ne, %1, %c0_i32_0 : i32
    scf.if %2 {
      %cst_17 = arith.constant 0.000000e+00 : f32
      %20 = vector.broadcast %cst_17 : f32 to vector<1x8x128xf32>
      %c0_18 = arith.constant 0 : index
      %c0_19 = arith.constant 0 : index
      %c0_20 = arith.constant 0 : index
      %21 = vector.load %arg4[%c0_18, %c0_19, %c0_20] : memref<1x8x128xf32, #tpu.memory_space<vmem>>, vector<1x8x128xf32>
      tpu.vector_store %arg4[%c0_18, %c0_19, %c0_20], %20 {strides = array<i32>} : memref<1x8x128xf32, #tpu.memory_space<vmem>>, vector<1x8x128xf32>,
      %cst_21 = arith.constant 0.000000e+00 : f32
      %22 = vector.broadcast %cst_21 : f32 to vector<1x8x128xf32>
      %c0_22 = arith.constant 0 : index
      %c0_23 = arith.constant 0 : index
      %c0_24 = arith.constant 0 : index
      %23 = vector.load %arg5[%c0_22, %c0_23, %c0_24] : memref<1x8x128xf32, #tpu.memory_space<vmem>>, vector<1x8x128xf32>
      tpu.vector_store %arg5[%c0_22, %c0_23, %c0_24], %22 {strides = array<i32>} : memref<1x8x128xf32, #tpu.memory_space<vmem>>, vector<1x8x128xf32>,
    } else {
    }
    %c0 = arith.constant 0 : index
    %c0_1 = arith.constant 0 : index
    %3 = vector.load %arg2[%c0, %c0_1] : memref<16x128xf32, #tpu.memory_space<vmem>>, vector<16x128xf32>
    %c0_2 = arith.constant 0 : index
    %c0_3 = arith.constant 0 : index
    %4 = vector.load %arg3[%c0_2, %c0_3] : memref<16x128xf32, #tpu.memory_space<vmem>>, vector<16x128xf32>
    %5 = arith.subf %3, %4 : vector<16x128xf32>
    %6 = arith.mulf %5, %5 : vector<16x128xf32>
    %7 = vector.shape_cast %6 : vector<16x128xf32> to vector<2x8x128xf32>
    %8 = math.absf %5 : vector<16x128xf32>
    %9 = vector.shape_cast %8 : vector<16x128xf32> to vector<2x8x128xf32>
    %c0_4 = arith.constant 0 : index
    %c0_5 = arith.constant 0 : index
    %c0_6 = arith.constant 0 : index
    %10 = vector.load %arg4[%c0_4, %c0_5, %c0_6] : memref<1x8x128xf32, #tpu.memory_space<vmem>>, vector<1x8x128xf32>
    %cst = arith.constant dense<0.000000e+00> : vector<8x128xf32>
    %11 = vector.multi_reduction <add>, %7, %cst [0] : vector<2x8x128xf32> to vector<8x128xf32>
    %12 = vector.shape_cast %11 : vector<8x128xf32> to vector<1x8x128xf32>
    %13 = arith.addf %10, %12 : vector<1x8x128xf32>
    %c0_7 = arith.constant 0 : index
    %c0_8 = arith.constant 0 : index
    %c0_9 = arith.constant 0 : index
    %14 = vector.load %arg4[%c0_7, %c0_8, %c0_9] : memref<1x8x128xf32, #tpu.memory_space<vmem>>, vector<1x8x128xf32>
    tpu.vector_store %arg4[%c0_7, %c0_8, %c0_9], %13 {strides = array<i32>} : memref<1x8x128xf32, #tpu.memory_space<vmem>>, vector<1x8x128xf32>,
    %c0_10 = arith.constant 0 : index
    %c0_11 = arith.constant 0 : index
    %c0_12 = arith.constant 0 : index
    %15 = vector.load %arg5[%c0_10, %c0_11, %c0_12] : memref<1x8x128xf32, #tpu.memory_space<vmem>>, vector<1x8x128xf32>
    %cst_13 = arith.constant dense<0.000000e+00> : vector<8x128xf32>
    %16 = vector.multi_reduction <add>, %9, %cst_13 [0] : vector<2x8x128xf32> to vector<8x128xf32>
    %17 = vector.shape_cast %16 : vector<8x128xf32> to vector<1x8x128xf32>
    %18 = arith.addf %15, %17 : vector<1x8x128xf32>
    %c0_14 = arith.constant 0 : index
    %c0_15 = arith.constant 0 : index
    %c0_16 = arith.constant 0 : index
    %19 = vector.load %arg5[%c0_14, %c0_15, %c0_16] : memref<1x8x128xf32, #tpu.memory_space<vmem>>, vector<1x8x128xf32>
    tpu.vector_store %arg5[%c0_14, %c0_15, %c0_16], %18 {strides = array<i32>} : memref<1x8x128xf32, #tpu.memory_space<vmem>>, vector<1x8x128xf32>,
    return
  }
  func.func @transform_0(%arg0: i32, %arg1: i32) -> (i32, i32) {
    %c1_i32 = arith.constant 1 : i32
    %0 = arith.muli %arg0, %c1_i32 : i32
    %1 = arith.addi %0, %arg1 : i32
    %c0_i32 = arith.constant 0 : i32
    %c0_i32_0 = arith.constant 0 : i32
    return %1, %c0_i32 : i32, i32
  }
  func.func @transform_1(%arg0: i32, %arg1: i32) -> (i32, i32) {
    %c1_i32 = arith.constant 1 : i32
    %0 = arith.muli %arg0, %c1_i32 : i32
    %1 = arith.addi %0, %arg1 : i32
    %c0_i32 = arith.constant 0 : i32
    %c0_i32_0 = arith.constant 0 : i32
    return %1, %c0_i32 : i32, i32
  }
  func.func @transform_2(%arg0: i32, %arg1: i32) -> (i32, i32, i32) {
    %c0_i32 = arith.constant 0 : i32
    %c0_i32_0 = arith.constant 0 : i32
    %c0_i32_1 = arith.constant 0 : i32
    return %arg0, %c0_i32, %c0_i32_0 : i32, i32, i32
  }
  func.func @transform_3(%arg0: i32, %arg1: i32) -> (i32, i32, i32) {
    %c0_i32 = arith.constant 0 : i32
    %c0_i32_0 = arith.constant 0 : i32
    %c0_i32_1 = arith.constant 0 : i32
    return %arg0, %c0_i32, %c0_i32_0 : i32, i32, i32
  }
}

</mosaic_0001>

<llo_original>
// kernel: tpu_custom_call.1
$region0: #{tpu_custom_call.1}
  #allocation0 [shape = 'u32[]', space=smem, size = 0x4, offset = 0x4, fixed_abs, tag = 'smem constant byte address 0x4 - core index']
  #allocation1 [shape = 'u32[144,128]{1,0:T(1,128)}', space=vmem, size = 0x12000, scoped, tag = 'internal scratch']
  %s0 = inlined_call_operand.hbm [shape: f32[32,128], index: 0, kind: input, shape index: {}]
  %s1 = inlined_call_operand.hbm [shape: f32[32,128], index: 1, kind: input, shape index: {}]
  %s2 = inlined_call_operand.hbm [shape: f32[2,8,128], index: 2, kind: output, shape index: {0}]
  %s3 = inlined_call_operand.hbm [shape: f32[2,8,128], index: 3, kind: output, shape index: {1}]
  %4 = xla_tuple %s2, %s3
  %s5 = sld [smem:[#allocation0]]
  $region61: #{tpu_custom_call.1} parent=0
    _
  %s7 = ssub.s32 1, %s5
  %s8 = scalar_select 0, %s7, %s5
  $region1: #{tpu_custom_call.1} parent=0
    #allocation2 [shape = 'u8[16384]{0}', space=vmem, size = 0x4000, scoped, tag = 'input window, operand 0']
    #allocation3 [shape = 's32[2]{0}', space=sflag, size = 0x8, scoped, tag = 'scoped memory for tpu_custom_call.1']
    #allocation4 [shape = 's32[2]{0}', space=sflag, size = 0x8, scoped, tag = 'scoped memory for tpu_custom_call.1']
    #allocation5 [shape = 'u8[16384]{0}', space=vmem, size = 0x4000, scoped, tag = 'input window, operand 1']
    #allocation6 [shape = 's32[2]{0}', space=sflag, size = 0x8, scoped, tag = 'scoped memory for tpu_custom_call.1']
    #allocation7 [shape = 'u8[8192]{0}', space=vmem, size = 0x2000, scoped, tag = 'output window, operand 0']
    #allocation8 [shape = 'u8[8192]{0}', space=vmem, size = 0x2000, scoped, tag = 'output window, operand 1']
    #allocation9 [shape = 's32[2]{0}', space=sflag, size = 0x8, scoped, tag = 'scoped memory for tpu_custom_call.1']
    %9 = vsyncpa [#allocation3], 0
    %s10 = scalar_lea.sflag [#allocation3], 1
    %11 = vsyncpa %s10, 0
    %12 = vsyncpa [#allocation6], 0
    %s13 = scalar_lea.sflag [#allocation6], 1
    %14 = vsyncpa %s13, 0
    %15 = vsyncpa [#allocation4], 0
    %s16 = scalar_lea.sflag [#allocation4], 1
    %17 = vsyncpa %s16, 0
    %18 = vsyncpa [#allocation9], 0
    %s19 = scalar_lea.sflag [#allocation9], 1
    %20 = vsyncpa %s19, 0
    loop: start=0, step=1, limit=4
    $region2: #{tpu_custom_call.1} parent=1 // loop_pre_header
      _
    $region3: #{tpu_custom_call.1} parent=1 // loop_header
      %s22 = sphi 0, %s26
      %p23 = scmp.ge.s32.totalorder %s22, 4
      %s29 = sphi 0, %s41
      %s30 = sphi 0, %s37
      %s31 = sphi 0, %s29
      %s32 = sphi 0, %s30
      %s33 = sphi 0, %s31
      %s34 = sphi 0, %s32
      %s46 = sphi 0, %s48
      %s49 = sphi 0, %s46
      %s50 = sphi 0, %s49
      %s66 = sphi 0, %s50
      %s74 = sphi 0, %s76
      %s77 = sphi 0, %s74
      %s78 = sphi 0, %s77
      %s94 = sphi 0, %s78
      %s100 = sphi 0, %s102
      %s103 = sphi 0, %s100
      %s104 = sphi 0, %s103
      %s120 = sphi 0, %s104
      %s126 = sphi 0, %s128
      %s129 = sphi 0, %s126
      %s130 = sphi 0, %s129
      %s146 = sphi 0, %s130
    $region4: #{tpu_custom_call.1} parent=1 // loop_header_branch
      %25 = sbr.rel (%p23) target = $region8
    $region5: #{tpu_custom_call.1} parent=1 // loop_body
      %s27 = ssub.s32 %s22, 1
      %s28 = ssub.s32 %s22, 2
      %s35 = sadd.s32 1, %s30
      %p36 = scmp.ge.s32.totalorder %s35, 1
      %s37 = scalar_select %p36, 0, %s35
      %s38 = sadd.s32 1, %s29
      %s39 = scalar_select %p36, %s38, %s29
      %p40 = scmp.ge.s32.totalorder %s39, 2
      %s41 = scalar_select %p40, 0, %s39
      %s42 = sadd.s32 %s29, %s30
      %s43 = sadd.s32 %s41, %s37
      %s44 = ssub.s32 %s42, %s43
      %p45 = scmp.eq.s32.totalorder %s44, 0
      %s47 = sadd.s32 %s46, 1
      %s48 = scalar_select %p45, %s46, %s47
      %p51 = pneg %p45
      %p52 = scmp.eq.s32.totalorder %s22, 1
      %p53 = por %p51, %p52
      %p54 = scmp.ne.s32.totalorder %s46, %s49
      %p55 = scmp.eq.s32.totalorder %s22, 0
      %p56 = por %p54, %p55
      %p57 = scmp.ne.s32.totalorder %s46, %s49
      %p58 = scmp.eq.s32.totalorder %s27, 1
      %p59 = por %p57, %p58
      %p60 = scmp.ne.s32.totalorder %s49, %s50
      %p61 = scmp.eq.s32.totalorder %s27, 0
      %p62 = por %p60, %p61
      %p63 = scmp.ne.s32.totalorder %s49, %s50
      %p64 = scmp.eq.s32.totalorder %s28, 1
      %p65 = por %p63, %p64
      %p67 = scmp.ne.s32.totalorder %s50, %s66
      %p68 = scmp.eq.s32.totalorder %s28, 0
      %p69 = por %p67, %p68
      %s70 = sadd.s32 %s29, %s30
      %s71 = sadd.s32 %s41, %s37
      %s72 = ssub.s32 %s70, %s71
      %p73 = scmp.eq.s32.totalorder %s72, 0
      %s75 = sadd.s32 %s74, 1
      %s76 = scalar_select %p73, %s74, %s75
      %p79 = pneg %p73
      %p80 = scmp.eq.s32.totalorder %s22, 1
      %p81 = por %p79, %p80
      %p82 = scmp.ne.s32.totalorder %s74, %s77
      %p83 = scmp.eq.s32.totalorder %s22, 0
      %p84 = por %p82, %p83
      %p85 = scmp.ne.s32.totalorder %s74, %s77
      %p86 = scmp.eq.s32.totalorder %s27, 1
      %p87 = por %p85, %p86
      %p88 = scmp.ne.s32.totalorder %s77, %s78
      %p89 = scmp.eq.s32.totalorder %s27, 0
      %p90 = por %p88, %p89
      %p91 = scmp.ne.s32.totalorder %s77, %s78
      %p92 = scmp.eq.s32.totalorder %s28, 1
      %p93 = por %p91, %p92
      %p95 = scmp.ne.s32.totalorder %s78, %s94
      %p96 = scmp.eq.s32.totalorder %s28, 0
      %p97 = por %p95, %p96
      %s98 = ssub.s32 %s29, %s41
      %p99 = scmp.eq.s32.totalorder %s98, 0
      %s101 = sadd.s32 %s100, 1
      %s102 = scalar_select %p99, %s100, %s101
      %p105 = pneg %p99
      %p106 = scmp.eq.s32.totalorder %s22, 1
      %p107 = por %p105, %p106
      %p108 = scmp.ne.s32.totalorder %s100, %s103
      %p109 = scmp.eq.s32.totalorder %s22, 0
      %p110 = por %p108, %p109
      %p111 = scmp.ne.s32.totalorder %s100, %s103
      %p112 = scmp.eq.s32.totalorder %s27, 1
      %p113 = por %p111, %p112
      %p114 = scmp.ne.s32.totalorder %s103, %s104
      %p115 = scmp.eq.s32.totalorder %s27, 0
      %p116 = por %p114, %p115
      %p117 = scmp.ne.s32.totalorder %s103, %s104
      %p118 = scmp.eq.s32.totalorder %s28, 1
      %p119 = por %p117, %p118
      %p121 = scmp.ne.s32.totalorder %s104, %s120
      %p122 = scmp.eq.s32.totalorder %s28, 0
      %p123 = por %p121, %p122
      %s124 = ssub.s32 %s29, %s41
      %p125 = scmp.eq.s32.totalorder %s124, 0
      %s127 = sadd.s32 %s126, 1
      %s128 = scalar_select %p125, %s126, %s127
      %p131 = pneg %p125
      %p132 = scmp.eq.s32.totalorder %s22, 1
      %p133 = por %p131, %p132
      %p134 = scmp.ne.s32.totalorder %s126, %s129
      %p135 = scmp.eq.s32.totalorder %s22, 0
      %p136 = por %p134, %p135
      %p137 = scmp.ne.s32.totalorder %s126, %s129
      %p138 = scmp.eq.s32.totalorder %s27, 1
      %p139 = por %p137, %p138
      %p140 = scmp.ne.s32.totalorder %s129, %s130
      %p141 = scmp.eq.s32.totalorder %s27, 0
      %p142 = por %p140, %p141
      %p143 = scmp.ne.s32.totalorder %s129, %s130
      %p144 = scmp.eq.s32.totalorder %s28, 1
      %p145 = por %p143, %p144
      %p147 = scmp.ne.s32.totalorder %s130, %s146
      %p148 = scmp.eq.s32.totalorder %s28, 0
      %p149 = por %p147, %p148
      %p150 = scmp.le.s32.totalorder 1, %s22
      %p151 = scmp.lt.s32.totalorder %s22, 3
      %p152 = pnand %p150, %p151
      %p153 = pneg %p152
      // Predicated region
      $region9: #{tpu_custom_call.1} parent=5 // pred_check
        _
      $region10: #{tpu_custom_call.1} parent=5 // pred_check_branch
        %155 = sbr.rel (%p152) target = $region12
      $region11: #{tpu_custom_call.1} parent=5 // pred_region
        %s156 = ssub.s32 %s22, 1
      $region12: #{tpu_custom_call.1} parent=5 // pred_fallthru
        _
      %p157 = scmp.lt.s32.totalorder %s22, 2
      // Predicated region
      $region13: #{tpu_custom_call.1} parent=5 // pred_check
        %p158 = pneg %p157
      $region14: #{tpu_custom_call.1} parent=5 // pred_check_branch
        %160 = sbr.rel (%p158) target = $region16
      $region15: #{tpu_custom_call.1} parent=5 // pred_region
        // Predicated region
        $region17: #{tpu_custom_call.1} parent=15 // pred_check
          %p161 = pneg %p56
        $region18: #{tpu_custom_call.1} parent=15 // pred_check_branch
          %163 = sbr.rel (%p161) target = $region20
        $region19: #{tpu_custom_call.1} parent=15 // pred_region
          %s164 = sand.u32 %s46, 1
          %s165 = scalar_lea.sflag [#allocation3], %s164
          %s166 = sand.u32 %s46, 1
          %s167 = smul.addr %s166, 16
          %s168 = scalar_lea.vmem [#allocation2], %s167
          %s169 = sadd.s32 %s29, %s30
          %s170 = smul.u32 2, %s169
          %s172 = ssub.s32 256, 256
          %173 = vsyncadd %s165, %s172
          %s174 = smul.addr %s170, 128
          %s175 = scalar_lea.hbm %s0, %s174
          %s176 = sshll.u32 %s168, 4
          %s177 = int_to_ptr.vmem [resolvable:$true] %s176
          %182 = dma.hbm_to_vmem [thread:$0]  %s175, 256, %s177, %s165, 128, 128, 8
        $region20: #{tpu_custom_call.1} parent=15 // pred_fallthru
          _
        // Predicated region
        $region21: #{tpu_custom_call.1} parent=15 // pred_check
          %p183 = pneg %p84
        $region22: #{tpu_custom_call.1} parent=15 // pred_check_branch
          %185 = sbr.rel (%p183) target = $region24
        $region23: #{tpu_custom_call.1} parent=15 // pred_region
          %s186 = sand.u32 %s74, 1
          %s187 = scalar_lea.sflag [#allocation6], %s186
          %s188 = sand.u32 %s74, 1
          %s189 = smul.addr %s188, 16
          %s190 = scalar_lea.vmem [#allocation5], %s189
          %s191 = sadd.s32 %s29, %s30
          %s192 = smul.u32 2, %s191
          %s194 = ssub.s32 256, 256
          %195 = vsyncadd %s187, %s194
          %s196 = smul.addr %s192, 128
          %s197 = scalar_lea.hbm %s1, %s196
          %s198 = sshll.u32 %s190, 4
          %s199 = int_to_ptr.vmem [resolvable:$true] %s198
          %204 = dma.hbm_to_vmem [thread:$0]  %s197, 256, %s199, %s187, 128, 128, 8
        $region24: #{tpu_custom_call.1} parent=15 // pred_fallthru
          _
      $region16: #{tpu_custom_call.1} parent=5 // pred_fallthru
        _
      %p205 = scmp.le.s32.totalorder 1, %s22
      %p206 = scmp.lt.s32.totalorder %s22, 3
      %p207 = pnand %p205, %p206
      %p208 = pneg %p207
      // Predicated region
      $region25: #{tpu_custom_call.1} parent=5 // pred_check
        _
      $region26: #{tpu_custom_call.1} parent=5 // pred_check_branch
        %210 = sbr.rel (%p207) target = $region28
      $region27: #{tpu_custom_call.1} parent=5 // pred_region
        %s211 = ssub.s32 %s22, 1
        %s212 = sand.u32 %s49, 1
        %s213 = scalar_lea.sflag [#allocation3], %s212
        %s214 = sand.u32 %s49, 1
        %s215 = smul.addr %s214, 16
        %s216 = scalar_lea.vmem [#allocation2], %s215
        // Predicated region
        $region29: #{tpu_custom_call.1} parent=27 // pred_check
          %p217 = pneg %p62
        $region30: #{tpu_custom_call.1} parent=27 // pred_check_branch
          %219 = sbr.rel (%p217) target = $region32
        $region31: #{tpu_custom_call.1} parent=27 // pred_region
          %220 = dma.done %s213, 256
        $region32: #{tpu_custom_call.1} parent=27 // pred_fallthru
          _
        %s221 = sand.u32 %s77, 1
        %s222 = scalar_lea.sflag [#allocation6], %s221
        %s223 = sand.u32 %s77, 1
        %s224 = smul.addr %s223, 16
        %s225 = scalar_lea.vmem [#allocation5], %s224
        // Predicated region
        $region33: #{tpu_custom_call.1} parent=27 // pred_check
          %p226 = pneg %p90
        $region34: #{tpu_custom_call.1} parent=27 // pred_check_branch
          %228 = sbr.rel (%p226) target = $region36
        $region35: #{tpu_custom_call.1} parent=27 // pred_region
          %229 = dma.done %s222, 256
        $region36: #{tpu_custom_call.1} parent=27 // pred_fallthru
          _
        %s230 = sand.u32 %s49, 1
        %s231 = scalar_lea.sflag [#allocation3], %s230
        %s232 = sand.u32 %s49, 1
        %s233 = smul.addr %s232, 16
        %s234 = scalar_lea.vmem [#allocation2], %s233
        %p235 = pneg %p62
        %p236 = pneg %p59
        %s237 = sand.u32 %s77, 1
        %s238 = scalar_lea.sflag [#allocation6], %s237
        %s239 = sand.u32 %s77, 1
        %s240 = smul.addr %s239, 16
        %s241 = scalar_lea.vmem [#allocation5], %s240
        %p242 = pneg %p90
        %p243 = pneg %p87
        %p244 = pneg %p116
        %p245 = pneg %p113
        %s246 = sand.u32 %s103, 1
        %s247 = scalar_lea.sflag [#allocation4], %s246
        %s248 = sand.u32 %s103, 1
        %s249 = smul.addr %s248, 8
        %s250 = scalar_lea.vmem [#allocation7], %s249
        %p251 = pneg %p142
        %p252 = pneg %p139
        %s253 = sand.u32 %s129, 1
        %s254 = scalar_lea.sflag [#allocation9], %s253
        %s255 = sand.u32 %s129, 1
        %s256 = smul.addr %s255, 8
        %s257 = scalar_lea.vmem [#allocation8], %s256
        %s258 = sadd.s32 %s31, %s32
        %s259 = smul.u32 2, %s258
        %s260 = sadd.s32 %s31, %s32
        %s261 = smul.u32 2, %s260
        %p262 = scmp.eq.s32.totalorder %s32, 0
        // Predicated region
        $region37: #{tpu_custom_call.1} parent=27 // pred_check
          %p263 = pneg %p262
        $region38: #{tpu_custom_call.1} parent=27 // pred_check_branch
          %265 = sbr.rel (%p263) target = $region40
        $region39: #{tpu_custom_call.1} parent=27 // pred_region
          %266 = vst [vmem:[%s250] sm:$0xff] 0.0
          %267 = vst [vmem:[%s257] sm:$0xff] 0.0
        $region40: #{tpu_custom_call.1} parent=27 // pred_fallthru
          _
        %v268 = vld [vmem:[%s216] sm:$0xff]
        %v269 = vld [vmem:[%s216 + $0x8] sm:$0xff]
        %v270 = vld [vmem:[%s225] sm:$0xff]
        %v271 = vld [vmem:[%s225 + $0x8] sm:$0xff]
        %v272 = vsub.f32 %v268, %v270
        %v273 = vsub.f32 %v269, %v271
        %v274 = vmul.f32 %v272, %v272
        %v275 = vmul.f32 %v273, %v273
        %v276 = vand.u32 2147483647, %v272
        %v277 = vand.u32 2147483647, %v273
        %v278 = vld [vmem:[%s250] sm:$0xff]
        %v279 = vadd.f32 %v274, %v275
        %v280 = vadd.f32 %v278, %v279
        %281 = vst [vmem:[%s250] sm:$0xff] %v280
        %v282 = vld [vmem:[%s257] sm:$0xff]
        %v283 = vadd.f32 %v276, %v277
        %v284 = vadd.f32 %v282, %v283
        %285 = vst [vmem:[%s257] sm:$0xff] %v284
        %s286 = sand.u32 %s103, 1
        %s287 = scalar_lea.sflag [#allocation4], %s286
        %s288 = sand.u32 %s103, 1
        %s289 = smul.addr %s288, 8
        %s290 = scalar_lea.vmem [#allocation7], %s289
        %s291 = sand.u32 %s129, 1
        %s292 = scalar_lea.sflag [#allocation9], %s291
        %s293 = sand.u32 %s129, 1
        %s294 = smul.addr %s293, 8
        %s295 = scalar_lea.vmem [#allocation8], %s294
        // Predicated region
        $region41: #{tpu_custom_call.1} parent=27 // pred_check
          %p296 = pneg %p113
        $region42: #{tpu_custom_call.1} parent=27 // pred_check_branch
          %298 = sbr.rel (%p296) target = $region44
        $region43: #{tpu_custom_call.1} parent=27 // pred_region
          %s300 = ssub.s32 128, 128
          %301 = vsyncadd %s287, %s300
          %s302 = smul.addr %s31, 128
          %s303 = scalar_lea.hbm %s2, %s302
          %s305 = sshll.u32 %s290, 4
          %s306 = int_to_ptr.vmem [resolvable:$true] %s305
          %308 = dma.vmem_to_hbm [thread:$0]  %s306, 128, %s303, %s287
        $region44: #{tpu_custom_call.1} parent=27 // pred_fallthru
          _
        // Predicated region
        $region45: #{tpu_custom_call.1} parent=27 // pred_check
          %p309 = pneg %p139
        $region46: #{tpu_custom_call.1} parent=27 // pred_check_branch
          %311 = sbr.rel (%p309) target = $region48
        $region47: #{tpu_custom_call.1} parent=27 // pred_region
          %s313 = ssub.s32 128, 128
          %314 = vsyncadd %s292, %s313
          %s315 = smul.addr %s31, 128
          %s316 = scalar_lea.hbm %s3, %s315
          %s318 = sshll.u32 %s295, 4
          %s319 = int_to_ptr.vmem [resolvable:$true] %s318
          %321 = dma.vmem_to_hbm [thread:$0]  %s319, 128, %s316, %s292
        $region48: #{tpu_custom_call.1} parent=27 // pred_fallthru
          _
      $region28: #{tpu_custom_call.1} parent=5 // pred_fallthru
        _
      %p322 = scmp.le.s32.totalorder 2, %s22
      // Predicated region
      $region49: #{tpu_custom_call.1} parent=5 // pred_check
        %p323 = pneg %p322
      $region50: #{tpu_custom_call.1} parent=5 // pred_check_branch
        %325 = sbr.rel (%p323) target = $region52
      $region51: #{tpu_custom_call.1} parent=5 // pred_region
        %s326 = ssub.s32 %s22, 2
        // Predicated region
        $region53: #{tpu_custom_call.1} parent=51 // pred_check
          %p327 = pneg %p119
        $region54: #{tpu_custom_call.1} parent=51 // pred_check_branch
          %329 = sbr.rel (%p327) target = $region56
        $region55: #{tpu_custom_call.1} parent=51 // pred_region
          %s330 = sand.u32 %s104, 1
          %s331 = scalar_lea.sflag [#allocation4], %s330
          %s332 = sand.u32 %s104, 1
          %s333 = smul.addr %s332, 8
          %s334 = scalar_lea.vmem [#allocation7], %s333
          %335 = dma.done %s331, 128
        $region56: #{tpu_custom_call.1} parent=51 // pred_fallthru
          _
        // Predicated region
        $region57: #{tpu_custom_call.1} parent=51 // pred_check
          %p336 = pneg %p145
        $region58: #{tpu_custom_call.1} parent=51 // pred_check_branch
          %338 = sbr.rel (%p336) target = $region60
        $region59: #{tpu_custom_call.1} parent=51 // pred_region
          %s339 = sand.u32 %s130, 1
          %s340 = scalar_lea.sflag [#allocation9], %s339
          %s341 = sand.u32 %s130, 1
          %s342 = smul.addr %s341, 8
          %s343 = scalar_lea.vmem [#allocation8], %s342
          %344 = dma.done %s340, 128
        $region60: #{tpu_custom_call.1} parent=51 // pred_fallthru
          _
      $region52: #{tpu_custom_call.1} parent=5 // pred_fallthru
        _
    $region6: #{tpu_custom_call.1} parent=1 // loop_footer
      %s26 = sadd.s32 1, %s22
    $region7: #{tpu_custom_call.1} parent=1 // loop_footer_branch
      %21 = sbr.rel target = $region3
    $region8: #{tpu_custom_call.1} parent=1 // loop_exit
      _
    %345 = vsyncpa [#allocation3], 1
    %s346 = scalar_lea.sflag [#allocation3], 1
    %347 = vsyncpa %s346, 1
    %348 = vsyncpa [#allocation6], 1
    %s349 = scalar_lea.sflag [#allocation6], 1
    %350 = vsyncpa %s349, 1
    %351 = vsyncpa [#allocation4], 1
    %s352 = scalar_lea.sflag [#allocation4], 1
    %353 = vsyncpa %s352, 1
    %354 = vsyncpa [#allocation9], 1
    %s355 = scalar_lea.sflag [#allocation9], 1
    %356 = vsyncpa %s355, 1

</llo_original>
